<compile_context>
chip_gen: v7x
topology: tpu7x:2x2x1
jax: 0.10.0
libtpu: 0.0.40
codegen_flags: <defaults>
</compile_context>

<pallas_src>
import functools

import jax
import jax.numpy as jnp
from jax.experimental import pallas as pl
from jax.experimental.pallas import tpu as pltpu


_PAD_LOGIT = -1e30  # padded logit -> exactly zero loss contribution


def _round_up(v, m):
    return (v + m - 1) // m * m


def _focal_loss_kernel(x_ref, t_ref, o_ref, *, gamma):
    k = pl.program_id(1)

    @pl.when(k == 0)
    def _init():
        o_ref[...] = jnp.zeros_like(o_ref)

    x = x_ref[...].astype(jnp.float32)
    t = t_ref[...].astype(jnp.float32)

    # Stable BCE-with-logits collapsed to a softplus (2 EUP ops instead of 3):
    #   x - x*t + max(-x, 0) + log1p(exp(-|x|))
    bce = x - x * t + jnp.maximum(-x, 0.0) + jnp.log1p(jnp.exp(-jnp.abs(x)))

    # Focal factor exp(gamma * logsigmoid(z)) == sigmoid(z) ** gamma,
    # with z = -x * (2t - 1).
    z = -x * (t * 2.0 - 1.0)
    e_z = jnp.exp(-jnp.abs(z))
    g = float(gamma)
    if g == int(g) and 0 <= int(g) <= 8:
        # Integer gamma: sigmoid(z)**g via VALU multiplies (2 EUP ops total).
        # sigmoid(z) = 1/(1+e)   for z >= 0
        #            = e/(1+e)   for z <  0,   e = exp(-|z|)
        # (pl.reciprocal(1+e_z, approx=True) is a further EUP saving on v7x
        #  if ~1e-3 relative error is acceptable.)
        sig = jnp.where(z >= 0.0, 1.0, e_z) / (1.0 + e_z)
        factor = jnp.ones_like(sig)
        for _ in range(int(g)):
            factor = factor * sig
    else:
        # General (non-integer) gamma: stable logsigmoid path.
        invprobs = jnp.minimum(z, 0.0) - jnp.log1p(e_z)
        factor = jnp.exp(invprobs * g)

    # Accumulate this class-tile's per-row sum into the resident output block.
    o_ref[...] += jnp.sum(factor * bce, axis=1, keepdims=True)


def focal_loss(x, target, gamma=2.0, *, row_tile=512, class_tile=512):
    """Pallas TPU focal loss. x, target: (N, C). Returns (N,) float32."""
    if x.shape != target.shape:
        raise ValueError(
            "Target size ({}) must be the same as input size ({})".format(
                target.shape, x.shape))
    N, C = x.shape

    # Align tiles to (sublane=8, lane=128) and shrink for small problems so
    # padding stays negligible.
    row_tile = max(8, min(_round_up(row_tile, 8), _round_up(N, 8)))
    class_tile = max(128, min(_round_up(class_tile, 128), _round_up(C, 128)))

    n_pad = _round_up(N, row_tile)
    c_pad = _round_up(C, class_tile)
    if (n_pad, c_pad) != (N, C):
        # x = -1e30, t = 0 gives an exactly-zero contribution per padded
        # element (loss term cancels, focal factor underflows to 0).
        x = jnp.pad(x, ((0, n_pad - N), (0, c_pad - C)),
                    constant_values=_PAD_LOGIT)
        target = jnp.pad(target, ((0, n_pad - N), (0, c_pad - C)),
                         constant_values=0)

    grid = (n_pad // row_tile, c_pad // class_tile)
    kernel = functools.partial(_focal_loss_kernel, gamma=float(gamma))

    out = pl.pallas_call(
        kernel,
        out_shape=jax.ShapeDtypeStruct((n_pad, 1), jnp.float32),
        grid_spec=pltpu.PrefetchScalarGridSpec(
            num_scalar_prefetch=0,
            grid=grid,
            in_specs=[
                pl.BlockSpec((row_tile, class_tile), lambda i, k: (i, k)),
                pl.BlockSpec((row_tile, class_tile), lambda i, k: (i, k)),
            ],
            out_specs=pl.BlockSpec((row_tile, 1), lambda i, k: (i, 0)),
        ),
        compiler_params=pltpu.CompilerParams(
            dimension_semantics=("parallel", "arbitrary"),
            vmem_limit_bytes=32 * 1024 * 1024,
        ),
    )(x, target)
    return out[:N, 0]


def _focal_loss_ref(x, t, gamma=2.0):
    # Pure-JAX reference mirroring the PyTorch code line-by-line.
    x = x.astype(jnp.float32)
    t = t.astype(jnp.float32)
    max_val = jnp.maximum(-x, 0.0)  # (-x).clamp(min=0)
    loss = x - x * t + max_val + jnp.log(
        jnp.exp(-max_val) + jnp.exp(-x - max_val))
    invprobs = jax.nn.log_sigmoid(-x * (t * 2.0 - 1.0))
    loss = jnp.exp(invprobs * gamma) * loss
    return loss.sum(axis=1)


if __name__ == "__main__":
    key = jax.random.PRNGKey(0)
    k1, k2, k3, k4 = jax.random.split(key, 4)

    # Case 1: aligned shapes (N=8, C=128), default (auto-shrunk) tiles.
    x1 = jax.random.normal(k1, (8, 128), dtype=jnp.float32) * 2.0
    t1 = (jax.random.uniform(k2, (8, 128)) > 0.5).astype(jnp.float32)
    out1 = jax.block_until_ready(focal_loss(x1, t1, gamma=2.0))
    ref1 = _focal_loss_ref(x1, t1, gamma=2.0)
    assert out1.shape == (8,)
    assert jnp.allclose(out1, ref1, rtol=1e-5, atol=1e-4), (out1, ref1)

    # Case 2: ragged shapes (N=11, C=300) with small tiles to exercise
    # padding and the multi-tile class-axis accumulator path.
    x2 = jax.random.normal(k3, (11, 300), dtype=jnp.float32) * 2.0
    t2 = (jax.random.uniform(k4, (11, 300)) > 0.5).astype(jnp.float32)
    out2 = jax.block_until_ready(
        focal_loss(x2, t2, gamma=2.0, row_tile=8, class_tile=128))
    ref2 = _focal_loss_ref(x2, t2, gamma=2.0)
    assert out2.shape == (11,)
    assert jnp.allclose(out2, ref2, rtol=1e-5, atol=1e-4), (out2, ref2)

    print("KERNEL_OK")
</pallas_src>

<mosaic_0001>
module attributes {stable_mosaic.version = 11 : i64} {
  func.func @_focal_loss_kernel(%arg0: i32, %arg1: i32, %arg2: memref<8x128xf32, #tpu.memory_space<vmem>>, %arg3: memref<8x128xf32, #tpu.memory_space<vmem>>, %arg4: memref<8x1xf32, #tpu.memory_space<vmem>>) attributes {dimension_semantics = [#tpu.dimension_semantics<parallel>, #tpu.dimension_semantics<arbitrary>], iteration_bounds = array<i64: 1, 1>, scalar_prefetch = 0 : i64, scratch_operands = 0 : i64, tpu.core_type = #tpu.core_type<tc>, window_params = [{transform_indices = @transform_0, window_bounds = array<i64: 8, 128>}, {transform_indices = @transform_1, window_bounds = array<i64: 8, 128>}, {transform_indices = @transform_2, window_bounds = array<i64: 8, 1>}]} {
    %c0_i32 = arith.constant 0 : i32
    %0 = arith.cmpi eq, %arg1, %c0_i32 : i32
    %1 = arith.extui %0 : i1 to i32
    %c0_i32_0 = arith.constant 0 : i32
    %2 = arith.cmpi ne, %1, %c0_i32_0 : i32
    scf.if %2 {
      %cst_19 = arith.constant 0.000000e+00 : f32
      %45 = vector.broadcast %cst_19 : f32 to vector<8x1xf32>
      %c0_20 = arith.constant 0 : index
      %c0_21 = arith.constant 0 : index
      %46 = vector.load %arg4[%c0_20, %c0_21] : memref<8x1xf32, #tpu.memory_space<vmem>>, vector<8x1xf32>
      tpu.vector_store %arg4[%c0_20, %c0_21], %45 {strides = array<i32>} : memref<8x1xf32, #tpu.memory_space<vmem>>, vector<8x1xf32>,
    } else {
    }
    %c0 = arith.constant 0 : index
    %c0_1 = arith.constant 0 : index
    %3 = vector.load %arg2[%c0, %c0_1] : memref<8x128xf32, #tpu.memory_space<vmem>>, vector<8x128xf32>
    %c0_2 = arith.constant 0 : index
    %c0_3 = arith.constant 0 : index
    %4 = vector.load %arg3[%c0_2, %c0_3] : memref<8x128xf32, #tpu.memory_space<vmem>>, vector<8x128xf32>
    %5 = arith.mulf %3, %4 : vector<8x128xf32>
    %6 = arith.subf %3, %5 : vector<8x128xf32>
    %cst = arith.constant 0.000000e+00 : f32
    %7 = vector.broadcast %cst : f32 to vector<8x128xf32>
    %8 = arith.subf %7, %3 : vector<8x128xf32>
    %cst_4 = arith.constant 0.000000e+00 : f32
    %9 = vector.broadcast %cst_4 : f32 to vector<8x128xf32>
    %10 = arith.maximumf %8, %9 : vector<8x128xf32>
    %11 = arith.addf %6, %10 : vector<8x128xf32>
    %12 = math.absf %3 : vector<8x128xf32>
    %cst_5 = arith.constant 0.000000e+00 : f32
    %13 = vector.broadcast %cst_5 : f32 to vector<8x128xf32>
    %14 = arith.subf %13, %12 : vector<8x128xf32>
    %15 = math.exp %14 : vector<8x128xf32>
    %16 = math.log1p %15 : vector<8x128xf32>
    %17 = arith.addf %11, %16 : vector<8x128xf32>
    %cst_6 = arith.constant 0.000000e+00 : f32
    %18 = vector.broadcast %cst_6 : f32 to vector<8x128xf32>
    %19 = arith.subf %18, %3 : vector<8x128xf32>
    %cst_7 = arith.constant 2.000000e+00 : f32
    %20 = vector.broadcast %cst_7 : f32 to vector<8x128xf32>
    %21 = arith.mulf %4, %20 : vector<8x128xf32>
    %cst_8 = arith.constant 1.000000e+00 : f32
    %22 = vector.broadcast %cst_8 : f32 to vector<8x128xf32>
    %23 = arith.subf %21, %22 : vector<8x128xf32>
    %24 = arith.mulf %19, %23 : vector<8x128xf32>
    %25 = math.absf %24 : vector<8x128xf32>
    %cst_9 = arith.constant 0.000000e+00 : f32
    %26 = vector.broadcast %cst_9 : f32 to vector<8x128xf32>
    %27 = arith.subf %26, %25 : vector<8x128xf32>
    %28 = math.exp %27 : vector<8x128xf32>
    %cst_10 = arith.constant 0.000000e+00 : f32
    %29 = vector.broadcast %cst_10 : f32 to vector<8x128xf32>
    %30 = arith.cmpf oge, %24, %29 : vector<8x128xf32>
    %cst_11 = arith.constant 1.000000e+00 : f32
    %31 = vector.broadcast %cst_11 : f32 to vector<8x128xf32>
    %32 = arith.select %30, %31, %28 : vector<8x128xi1>, vector<8x128xf32>
    %cst_12 = arith.constant 1.000000e+00 : f32
    %33 = vector.broadcast %cst_12 : f32 to vector<8x128xf32>
    %34 = arith.addf %33, %28 : vector<8x128xf32>
    %35 = arith.divf %32, %34 : vector<8x128xf32>
    %cst_13 = arith.constant 1.000000e+00 : f32
    %36 = vector.broadcast %cst_13 : f32 to vector<8x128xf32>
    %37 = arith.mulf %36, %35 : vector<8x128xf32>
    %38 = arith.mulf %37, %35 : vector<8x128xf32>
    %c0_14 = arith.constant 0 : index
    %c0_15 = arith.constant 0 : index
    %39 = vector.load %arg4[%c0_14, %c0_15] : memref<8x1xf32, #tpu.memory_space<vmem>>, vector<8x1xf32>
    %40 = arith.mulf %38, %17 : vector<8x128xf32>
    %cst_16 = arith.constant dense<0.000000e+00> : vector<8xf32>
    %41 = vector.multi_reduction <add>, %40, %cst_16 [1] : vector<8x128xf32> to vector<8xf32>
    %42 = vector.shape_cast %41 : vector<8xf32> to vector<8x1xf32>
    %43 = arith.addf %39, %42 : vector<8x1xf32>
    %c0_17 = arith.constant 0 : index
    %c0_18 = arith.constant 0 : index
    %44 = vector.load %arg4[%c0_17, %c0_18] : memref<8x1xf32, #tpu.memory_space<vmem>>, vector<8x1xf32>
    tpu.vector_store %arg4[%c0_17, %c0_18], %43 {strides = array<i32>} : memref<8x1xf32, #tpu.memory_space<vmem>>, vector<8x1xf32>,
    return
  }
  func.func @transform_0(%arg0: i32, %arg1: i32) -> (i32, i32) {
    %c0_i32 = arith.constant 0 : i32
    return %arg0, %arg1 : i32, i32
  }
  func.func @transform_1(%arg0: i32, %arg1: i32) -> (i32, i32) {
    %c0_i32 = arith.constant 0 : i32
    return %arg0, %arg1 : i32, i32
  }
  func.func @transform_2(%arg0: i32, %arg1: i32) -> (i32, i32) {
    %c0_i32 = arith.constant 0 : i32
    %c0_i32_0 = arith.constant 0 : i32
    return %arg0, %c0_i32 : i32, i32
  }
}

</mosaic_0001>

<llo_original>
// kernel: tpu_custom_call.1
$region0: #{tpu_custom_call.1}
  #allocation0 [shape = 'u32[]', space=smem, size = 0x4, offset = 0x4, fixed_abs, tag = 'smem constant byte address 0x4 - core index']
  #allocation1 [shape = 'u32[144,128]{1,0:T(1,128)}', space=vmem, size = 0x12000, scoped, tag = 'internal scratch']
  %s0 = inlined_call_operand.hbm [shape: f32[8,128], index: 0, kind: input, shape index: {}]
  %s1 = inlined_call_operand.hbm [shape: f32[8,128], index: 1, kind: input, shape index: {}]
  %s2 = inlined_call_operand.vmem [shape: f32[8,1], index: 2, kind: output, shape index: {}]
  %s3 = sld [smem:[#allocation0]]
  $region30: #{tpu_custom_call.1} parent=0
    _
  %s5 = ssub.s32 1, %s3
  %s6 = scalar_select 0, %s5, %s3
  $region1: #{tpu_custom_call.1} parent=0
    #allocation2 [shape = 'u8[4096]{0}', space=vmem, size = 0x1000, scoped, tag = 'input window, operand 0, single buffered']
    #allocation3 [shape = 's32[1]{0}', space=sflag, size = 0x4, scoped, tag = 'scoped memory for tpu_custom_call.1']
    #allocation4 [shape = 'u8[4096]{0}', space=vmem, size = 0x1000, scoped, tag = 'input window, operand 1, single buffered']
    #allocation5 [shape = 's32[1]{0}', space=sflag, size = 0x4, scoped, tag = 'scoped memory for tpu_custom_call.1']
    %7 = vsyncpa [#allocation3], 0
    %8 = vsyncpa [#allocation5], 0
    // Predicated region
    $region2: #{tpu_custom_call.1} parent=1 // pred_check
      _
    $region3: #{tpu_custom_call.1} parent=1 // pred_check_branch
      %10 = sbr.rel (0) target = $region5
    $region4: #{tpu_custom_call.1} parent=1 // pred_region
      %s12 = ssub.s32 128, 128
      %13 = vsyncadd [#allocation3], %s12
      %s15 = sshll.u32 [#allocation2], 4
      %s16 = int_to_ptr.vmem [resolvable:$true] %s15
      %18 = dma.hbm_to_vmem [thread:$0]  %s0, 128, %s16, [#allocation3]
    $region5: #{tpu_custom_call.1} parent=1 // pred_fallthru
      _
    // Predicated region
    $region6: #{tpu_custom_call.1} parent=1 // pred_check
      _
    $region7: #{tpu_custom_call.1} parent=1 // pred_check_branch
      %20 = sbr.rel (0) target = $region9
    $region8: #{tpu_custom_call.1} parent=1 // pred_region
      %s22 = ssub.s32 128, 128
      %23 = vsyncadd [#allocation5], %s22
      %s25 = sshll.u32 [#allocation4], 4
      %s26 = int_to_ptr.vmem [resolvable:$true] %s25
      %28 = dma.hbm_to_vmem [thread:$0]  %s1, 128, %s26, [#allocation5]
    $region9: #{tpu_custom_call.1} parent=1 // pred_fallthru
      _
    // Predicated region
    $region10: #{tpu_custom_call.1} parent=1 // pred_check
      _
    $region11: #{tpu_custom_call.1} parent=1 // pred_check_branch
      %30 = sbr.rel (0) target = $region13
    $region12: #{tpu_custom_call.1} parent=1 // pred_region
      %31 = dma.done [#allocation3], 128
    $region13: #{tpu_custom_call.1} parent=1 // pred_fallthru
      _
    // Predicated region
    $region14: #{tpu_custom_call.1} parent=1 // pred_check
      _
    $region15: #{tpu_custom_call.1} parent=1 // pred_check_branch
      %33 = sbr.rel (0) target = $region17
    $region16: #{tpu_custom_call.1} parent=1 // pred_region
      %34 = dma.done [#allocation5], 128
    $region17: #{tpu_custom_call.1} parent=1 // pred_fallthru
      _
    %p35 = scmp.eq.s32.totalorder 0, 0
    // Predicated region
    $region18: #{tpu_custom_call.1} parent=1 // pred_check
      %p36 = pneg %p35
    $region19: #{tpu_custom_call.1} parent=1 // pred_check_branch
      %38 = sbr.rel (%p36) target = $region21
    $region20: #{tpu_custom_call.1} parent=1 // pred_region
      %vm39 = vcmask 7168
      %40 = vst.msk [vmem:[%s2] sm:$0xff] %vm39, 0.0
    $region21: #{tpu_custom_call.1} parent=1 // pred_fallthru
      _
    %v41 = vld [vmem:[#allocation2] sm:$0xff]
    %v42 = vld [vmem:[#allocation4] sm:$0xff]
    %v43 = vmul.f32 %v41, %v42
    %v44 = vsub.f32 %v41, %v43
    %v45 = vsub.f32 0.0, %v41
    %v46 = vmax.f32 %v45, 0.0
    %v47 = vadd.f32 %v44, %v46
    %v48 = vand.u32 2147483647, %v41
    %v49 = vsub.f32 0.0, %v48
    %v50 = vmul.f32 %v49, 1.442695
    %v51 = vpow.pop %v50
    %v52 = vadd.f32 %v51, 1.0
    %v53 = vlog2.pop %v52
    %v54 = vmul.f32 %v53, 0.6931472
    %v55 = vmul.f32 -0.5, %v51
    %v56 = vadd.f32 %v55, 1.0
    %v57 = vmul.f32 %v56, %v51
    %v58 = vand.u32 2147483647, %v51
    %vm59 = vcmp.lt.f32.partialorder %v58, 0.0004427343
    %v60 = vsel %vm59, %v57, %v54
    %v61 = vadd.f32 %v47, %v60
    %v62 = vmul.f32 %v42, 2.0
    %v63 = vsub.f32 %v62, 1.0
    %v64 = vmul.f32 %v45, %v63
    %v65 = vand.u32 2147483647, %v64
    %v66 = vsub.f32 0.0, %v65
    %v67 = vmul.f32 %v66, 1.442695
    %v68 = vpow.pop %v67
    %vm69 = vcmp.ge.f32.partialorder %v64, 0.0
    %v70 = vsel %vm69, 1.0, %v68
    %v71 = vadd.f32 %v68, 1.0
    %v72 = vrcp.pop %v71
    %v73 = vmul.f32 %v70, %v72
    %v74 = vmul.f32 %v73, %v73
    %v75 = vld [vmem:[%s2] sm:$0xff]
    %v76 = vmul.f32 %v74, %v61
    %77 = vadd.xlane.f32.xlu0 %v76
    %v78 = vpop.xlane.xlu0 %77
    %v79 = vadd.f32 %v75, %v78
    %vm80 = vcmask 7168
    %81 = vst.msk [vmem:[%s2] sm:$0xff] %vm80, %v79
    // Predicated region
    $region22: #{tpu_custom_call.1} parent=1 // pred_check
      _
    $region23: #{tpu_custom_call.1} parent=1 // pred_check_branch
      %83 = sbr.rel (0) target = $region25
    $region24: #{tpu_custom_call.1} parent=1 // pred_region
      _
    $region25: #{tpu_custom_call.1} parent=1 // pred_fallthru
      _
    // Predicated region
    $region26: #{tpu_custom_call.1} parent=1 // pred_check
      _
    $region27: #{tpu_custom_call.1} parent=1 // pred_check_branch
      %85 = sbr.rel (0) target = $region29
    $region28: #{tpu_custom_call.1} parent=1 // pred_region
      _
    $region29: #{tpu_custom_call.1} parent=1 // pred_fallthru
      _
    %86 = vsyncpa [#allocation3], 1
    %87 = vsyncpa [#allocation5], 1

</llo_original>
